<compile_context>
chip_gen: v7x
topology: tpu7x:2x2x1
jax: 0.10.0
libtpu: 0.0.40
codegen_flags: <defaults>
</compile_context>

<pallas_src>
import functools

import jax
import jax.numpy as jnp
from jax.experimental import pallas as pl
from jax.experimental.pallas import tpu as pltpu


def _round_up(v, m):
    return ((v + m - 1) // m) * m


def _mean_pool_kernel(batch_ref, inv_ref, x_ref, out_ref):
    """One (core_block, node_tile) grid step.

    batch_ref: (1, TN)  int32 graph ids (nodes on the lane axis)
    inv_ref:   (B, 1)   f32 precomputed 1/count (empty graphs -> 1, sum is 0)
    x_ref:     (TN, F)  node features
    out_ref:   (B, F)   f32 VMEM-resident accumulator for this core block
    """
    t = pl.program_id(1)  # node-tile (reduction) axis

    @pl.when(t == 0)
    def _():
        out_ref[...] = jnp.zeros_like(out_ref)

    b_ids = batch_ref[...]                      # (1, TN)
    num_graphs = out_ref.shape[0]
    tn = b_ids.shape[1]

    # one-hot[g, n] = 1 iff node n belongs to graph g; built in x's native
    # dtype (0/1 exact in bf16) so bf16 inputs hit the bf16 MXU path.
    graph_iota = jax.lax.broadcasted_iota(jnp.int32, (num_graphs, tn), 0)
    onehot = (graph_iota == b_ids).astype(x_ref.dtype)

    # per-graph partial sums on the MXU: (B, TN) @ (TN, F) -> (B, F), f32 acc
    out_ref[...] += jnp.dot(onehot, x_ref[...],
                            preferred_element_type=jnp.float32)

    @pl.when(t == pl.num_programs(1) - 1)
    def _():
        # broadcast multiply by the prefetched per-graph inverse counts
        out_ref[...] = out_ref[...] * inv_ref[...]


def _tpu_generation():
    """Returns (is_multi_tensorcore, physical_vmem_bytes) with safe fallbacks."""
    kind = ""
    try:
        kind = jax.devices()[0].device_kind.lower()
    except Exception:
        pass
    is_multi_tc = ("v7" in kind) or ("7x" in kind)
    try:
        vmem_cap = int(pltpu.get_tpu_info().vmem_capacity_bytes)
    except Exception:
        vmem_cap = (64 << 20) if is_multi_tc else (128 << 20)
    return is_multi_tc, vmem_cap


@functools.partial(jax.jit, static_argnames=("num_graphs", "node_tile"))
def global_mean_pool(x, batch, *, num_graphs, node_tile=None):
    """Pallas TPU equivalent of torch_geometric.nn.global_mean_pool.

    x: [N, F] float, batch: [N] int graph ids in [0, num_graphs).
    Returns [num_graphs, F] per-graph feature means (empty graphs -> 0).
    """
    n, f = x.shape
    batch = batch.astype(jnp.int32)
    itemsize = jnp.dtype(x.dtype).itemsize

    # Per-graph inverse counts, computed once (cheap) outside the kernel.
    counts = jax.ops.segment_sum(jnp.ones((n,), jnp.float32), batch,
                                 num_segments=num_graphs)
    inv = (1.0 / jnp.maximum(counts, 1.0)).reshape(num_graphs, 1)

    # ---- tiling / core-split decisions (all static Python) -----------------
    is_multi_tc, vmem_cap = _tpu_generation()
    num_cores = 2 if (is_multi_tc and n >= 512) else 1   # v7x: use both TCs

    f_lanes = _round_up(f, 128)                 # lane-padded feature width
    b_pad = _round_up(num_graphs, 8)            # sublane-padded graph count
    per_core_nodes = _round_up(pl.cdiv(n, num_cores), 256)

    if node_tile is None:
        # F-aware node tile: aim for a ~2-4 MiB x tile per DMA step.
        target_tile_bytes = (2 << 20) if is_multi_tc else (4 << 20)
        nt = (target_tile_bytes // (f_lanes * itemsize)) // 256 * 256
        nt = max(256, nt)
    else:
        nt = max(256, _round_up(node_tile, 256))
    nt = min(nt, per_core_nodes)                # don't over-pad small inputs

    # VMEM estimate including lane/sublane padding and per-step temporaries.
    def vmem_estimate(tile, x_bufs):
        return (
            x_bufs * tile * f_lanes * itemsize      # pipelined x tiles (lane-padded)
            + 2 * 8 * tile * 4                      # double-buffered (1, TN) i32 ids
            + 2 * b_pad * f_lanes * 4               # resident f32 output accumulator
            + b_pad * 128 * 4                       # inv-counts tile
            + b_pad * tile * (4 + 4 + itemsize)     # iota + mask + one-hot temporaries
        )

    usable_vmem = min(vmem_cap, (56 << 20) if is_multi_tc else (100 << 20))
    tile_budget = int(0.75 * usable_vmem)
    while nt > 256 and vmem_estimate(nt, 2) > tile_budget:
        nt -= 256

    # Pad the node axis so every core gets the same number of full tiles;
    # padded nodes get graph id num_graphs (never matches the one-hot).
    tiles_per_core = pl.cdiv(n, num_cores * nt)
    n_pad = num_cores * nt * tiles_per_core
    if n_pad != n:
        x = jnp.pad(x, ((0, n_pad - n), (0, 0)))
        batch = jnp.pad(batch, (0, n_pad - n), constant_values=num_graphs)
    batch_2d = batch.reshape(1, n_pad)

    # Deeper buffering on x only when the grid is long enough to benefit and
    # the VMEM budget has headroom.
    x_buffers = 3 if (tiles_per_core >= 4
                      and vmem_estimate(nt, 3) <= tile_budget) else 2

    def ids_index(c, t):
        return (0, c * tiles_per_core + t)

    def x_index(c, t):
        return (c * tiles_per_core + t, 0)

    if x_buffers == 3:
        x_spec = pl.BlockSpec((nt, f), x_index, pipeline_mode=pl.Buffered(3))
    else:
        x_spec = pl.BlockSpec((nt, f), x_index)

    vmem_limit = int(min(usable_vmem,
                         max(32 << 20, int(1.5 * vmem_estimate(nt, x_buffers)))))

    partial = pl.pallas_call(
        _mean_pool_kernel,
        out_shape=jax.ShapeDtypeStruct((num_cores, num_graphs, f), jnp.float32),
        grid_spec=pltpu.PrefetchScalarGridSpec(
            num_scalar_prefetch=0,
            grid=(num_cores, tiles_per_core),
            in_specs=[
                pl.BlockSpec((1, nt), ids_index),                    # graph ids
                pl.BlockSpec((num_graphs, 1), lambda c, t: (0, 0)),  # 1/count
                x_spec,                                              # features
            ],
            out_specs=pl.BlockSpec((None, num_graphs, f),
                                   lambda c, t: (c, 0, 0)),
        ),
        compiler_params=pltpu.CompilerParams(
            dimension_semantics=("parallel", "arbitrary"),
            vmem_limit_bytes=vmem_limit,
        ),
    )(batch_2d, inv, x)

    # Each per-core partial slab is already scaled by 1/count, so a plain sum
    # over the core axis yields the mean.  num_cores is 1 on v5e/v6e.
    out = partial[0] if num_cores == 1 else jnp.sum(partial, axis=0)
    return out if x.dtype == jnp.float32 else out.astype(x.dtype)


if __name__ == "__main__":
    key = jax.random.PRNGKey(0)

    N = 2000         # total nodes (deliberately not a tile multiple)
    F = 32           # node feature dim
    B = 8            # number of graphs in the batch

    kx, kb = jax.random.split(key)
    x = jax.random.normal(kx, (N, F), dtype=jnp.float32)
    # assign each node a graph id (sorted, like a typical PyG batch vector)
    batch = jnp.sort(jax.random.randint(kb, (N,), 0, B, dtype=jnp.int32))

    out = global_mean_pool(x, batch, num_graphs=B)
    out = jax.block_until_ready(out)

    # pure-JAX reference check
    sums = jax.ops.segment_sum(x, batch, num_segments=B)
    cnts = jax.ops.segment_sum(jnp.ones((N, 1), jnp.float32), batch,
                               num_segments=B)
    ref = sums / jnp.maximum(cnts, 1.0)
    assert jnp.allclose(out, ref, atol=1e-5, rtol=1e-5), "mismatch vs reference"

    print("KERNEL_OK")
</pallas_src>

<mosaic_0001>
module attributes {stable_mosaic.version = 11 : i64} {
  func.func private @main(%arg0: i32) attributes {dimension_semantics = [#tpu.dimension_semantics<core_parallel>], iteration_bounds = array<i64: 2>, tpu.core_type = #tpu.core_type<sc_scalar_subcore>, window_params = []} {
    return
  }
}

module attributes {stable_mosaic.version = 11 : i64} {
  func.func private @main(%arg0: i32) attributes {dimension_semantics = [#tpu.dimension_semantics<core_parallel>], iteration_bounds = array<i64: 2>, tpu.core_type = #tpu.core_type<sc_scalar_subcore>, window_params = []} {
    return
  }
}

module attributes {stable_mosaic.version = 11 : i64} {
  func.func @_mean_pool_kernel(%arg0: i32, %arg1: i32, %arg2: memref<1x2048xi32, #tpu.memory_space<vmem>>, %arg3: memref<8x1xf32, #tpu.memory_space<vmem>>, %arg4: memref<2048x32xf32, #tpu.memory_space<vmem>>, %arg5: memref<1x8x32xf32, #tpu.memory_space<vmem>>) attributes {dimension_semantics = [#tpu.dimension_semantics<parallel>, #tpu.dimension_semantics<arbitrary>], iteration_bounds = array<i64: 1, 1>, scalar_prefetch = 0 : i64, scratch_operands = 0 : i64, tpu.core_type = #tpu.core_type<tc>, window_params = [{transform_indices = @transform_0, window_bounds = array<i64: 1, 2048>}, {pipeline_mode = #tpu.pipeline_mode<synchronous>, transform_indices = @transform_1, window_bounds = array<i64: 8, 1>}, {transform_indices = @transform_2, window_bounds = array<i64: 2048, 32>}, {transform_indices = @transform_3, window_bounds = array<i64: 1, 8, 32>}]} {
    %c0_i32 = arith.constant 0 : i32
    %0 = arith.cmpi eq, %arg1, %c0_i32 : i32
    %1 = arith.extui %0 : i1 to i32
    %c0_i32_0 = arith.constant 0 : i32
    %2 = arith.cmpi ne, %1, %c0_i32_0 : i32
    scf.if %2 {
      %cst_12 = arith.constant 0.000000e+00 : f32
      %20 = vector.broadcast %cst_12 : f32 to vector<8x32xf32>
      %c0_13 = arith.constant 0 : index
      %c0_14 = arith.constant 0 : index
      %c0_15 = arith.constant 0 : index
      %21 = vector.load %arg5[%c0_13, %c0_14, %c0_15] : memref<1x8x32xf32, #tpu.memory_space<vmem>>, vector<1x8x32xf32>
      %22 = vector.shape_cast %21 : vector<1x8x32xf32> to vector<8x32xf32>
      %23 = vector.shape_cast %20 : vector<8x32xf32> to vector<1x8x32xf32>
      tpu.vector_store %arg5[%c0_13, %c0_14, %c0_15], %23 {strides = array<i32>} : memref<1x8x32xf32, #tpu.memory_space<vmem>>, vector<1x8x32xf32>,
    } else {
    }
    %c0 = arith.constant 0 : index
    %c0_1 = arith.constant 0 : index
    %3 = vector.load %arg2[%c0, %c0_1] : memref<1x2048xi32, #tpu.memory_space<vmem>>, vector<1x2048xi32>
    %4 = tpu.iota {dimensions = array<i32: 0>} : vector<8x2048xi32>
    %5 = vector.broadcast %3 : vector<1x2048xi32> to vector<8x2048xi32>
    %6 = arith.cmpi eq, %4, %5 : vector<8x2048xi32>
    %7 = arith.extui %6 : vector<8x2048xi1> to vector<8x2048xi32>
    %8 = arith.sitofp %7 : vector<8x2048xi32> to vector<8x2048xf32>
    %c0_2 = arith.constant 0 : index
    %c0_3 = arith.constant 0 : index
    %c0_4 = arith.constant 0 : index
    %9 = vector.load %arg5[%c0_2, %c0_3, %c0_4] : memref<1x8x32xf32, #tpu.memory_space<vmem>>, vector<1x8x32xf32>
    %10 = vector.shape_cast %9 : vector<1x8x32xf32> to vector<8x32xf32>
    %c0_5 = arith.constant 0 : index
    %c0_6 = arith.constant 0 : index
    %11 = vector.load %arg4[%c0_5, %c0_6] : memref<2048x32xf32, #tpu.memory_space<vmem>>, vector<2048x32xf32>
    %cst = arith.constant dense<0.000000e+00> : vector<8x32xf32>
    %12 = tpu.matmul %8, %11, %cst {dimension_numbers = #tpu.dot_dimension_numbers<[1], [0], [0], [1], [0, 0, 1, 1], [], []>} : vector<8x2048xf32>, vector<2048x32xf32>, vector<8x32xf32> -> vector<8x32xf32>
    %13 = arith.addf %10, %12 : vector<8x32xf32>
    %c0_7 = arith.constant 0 : index
    %c0_8 = arith.constant 0 : index
    %c0_9 = arith.constant 0 : index
    %14 = vector.load %arg5[%c0_7, %c0_8, %c0_9] : memref<1x8x32xf32, #tpu.memory_space<vmem>>, vector<1x8x32xf32>
    %15 = vector.shape_cast %14 : vector<1x8x32xf32> to vector<8x32xf32>
    %16 = vector.shape_cast %13 : vector<8x32xf32> to vector<1x8x32xf32>
    tpu.vector_store %arg5[%c0_7, %c0_8, %c0_9], %16 {strides = array<i32>} : memref<1x8x32xf32, #tpu.memory_space<vmem>>, vector<1x8x32xf32>,
    %c0_i32_10 = arith.constant 0 : i32
    %17 = arith.cmpi eq, %arg1, %c0_i32_10 : i32
    %18 = arith.extui %17 : i1 to i32
    %c0_i32_11 = arith.constant 0 : i32
    %19 = arith.cmpi ne, %18, %c0_i32_11 : i32
    scf.if %19 {
      %c0_12 = arith.constant 0 : index
      %c0_13 = arith.constant 0 : index
      %c0_14 = arith.constant 0 : index
      %20 = vector.load %arg5[%c0_12, %c0_13, %c0_14] : memref<1x8x32xf32, #tpu.memory_space<vmem>>, vector<1x8x32xf32>
      %21 = vector.shape_cast %20 : vector<1x8x32xf32> to vector<8x32xf32>
      %c0_15 = arith.constant 0 : index
      %c0_16 = arith.constant 0 : index
      %22 = vector.load %arg3[%c0_15, %c0_16] : memref<8x1xf32, #tpu.memory_space<vmem>>, vector<8x1xf32>
      %23 = vector.broadcast %22 : vector<8x1xf32> to vector<8x32xf32>
      %24 = arith.mulf %21, %23 : vector<8x32xf32>
      %c0_17 = arith.constant 0 : index
      %c0_18 = arith.constant 0 : index
      %c0_19 = arith.constant 0 : index
      %25 = vector.load %arg5[%c0_17, %c0_18, %c0_19] : memref<1x8x32xf32, #tpu.memory_space<vmem>>, vector<1x8x32xf32>
      %26 = vector.shape_cast %25 : vector<1x8x32xf32> to vector<8x32xf32>
      %27 = vector.shape_cast %24 : vector<8x32xf32> to vector<1x8x32xf32>
      tpu.vector_store %arg5[%c0_17, %c0_18, %c0_19], %27 {strides = array<i32>} : memref<1x8x32xf32, #tpu.memory_space<vmem>>, vector<1x8x32xf32>,
    } else {
    }
    return
  }
  func.func @transform_0(%arg0: i32, %arg1: i32) -> (i32, i32) {
    %c1_i32 = arith.constant 1 : i32
    %0 = arith.muli %arg0, %c1_i32 : i32
    %1 = arith.addi %0, %arg1 : i32
    %c0_i32 = arith.constant 0 : i32
    %c0_i32_0 = arith.constant 0 : i32
    return %c0_i32, %1 : i32, i32
  }
  func.func @transform_1(%arg0: i32, %arg1: i32) -> (i32, i32) {
    %c0_i32 = arith.constant 0 : i32
    %c0_i32_0 = arith.constant 0 : i32
    %c0_i32_1 = arith.constant 0 : i32
    return %c0_i32, %c0_i32_0 : i32, i32
  }
  func.func @transform_2(%arg0: i32, %arg1: i32) -> (i32, i32) {
    %c1_i32 = arith.constant 1 : i32
    %0 = arith.muli %arg0, %c1_i32 : i32
    %1 = arith.addi %0, %arg1 : i32
    %c0_i32 = arith.constant 0 : i32
    %c0_i32_0 = arith.constant 0 : i32
    return %1, %c0_i32 : i32, i32
  }
  func.func @transform_3(%arg0: i32, %arg1: i32) -> (i32, i32, i32) {
    %c0_i32 = arith.constant 0 : i32
    %c0_i32_0 = arith.constant 0 : i32
    %c0_i32_1 = arith.constant 0 : i32
    return %arg0, %c0_i32, %c0_i32_0 : i32, i32, i32
  }
}

</mosaic_0001>

<llo_original>
// kernel: global_mean_pool.1
$region0: #{global_mean_pool.1}
  #allocation0 [shape = 'u32[]', space=smem, size = 0x4, offset = 0x4, fixed_abs, tag = 'smem constant byte address 0x4 - core index']
  #allocation1 [shape = 'u32[144,128]{1,0:T(1,128)}', space=vmem, size = 0x12000, scoped, tag = 'internal scratch']
  %s0 = inlined_call_operand.vmem [shape: s32[1,2048], index: 0, kind: input, shape index: {}]
  %s1 = inlined_call_operand.vmem [shape: f32[8,1], index: 1, kind: input, shape index: {}]
  %s2 = inlined_call_operand.vmem [shape: f32[2048,32], index: 2, kind: input, shape index: {}]
  %s3 = inlined_call_operand.hbm [shape: f32[1,8,32], index: 3, kind: output, shape index: {}]
  %s4 = sld [smem:[#allocation0]]
  $region30: #{global_mean_pool.1} parent=0
    _
  %s6 = ssub.s32 1, %s4
  %s7 = scalar_select 0, %s6, %s4
  $region1: #{global_mean_pool.1} parent=0
    #allocation2 [shape = 'u8[4096]{0}', space=vmem, size = 0x1000, scoped, tag = 'output window, operand 0, single buffered']
    #allocation3 [shape = 's32[1]{0}', space=sflag, size = 0x4, scoped, tag = 'scoped memory for global_mean_pool.1']
    %8 = vsyncpa [#allocation3], 0
    // Predicated region
    $region2: #{global_mean_pool.1} parent=1 // pred_check
      _
    $region3: #{global_mean_pool.1} parent=1 // pred_check_branch
      %10 = sbr.rel (0) target = $region5
    $region4: #{global_mean_pool.1} parent=1 // pred_region
      %s11 = sadd.s32 0, 0
      %s12 = smul.u32 16, %s11
      %p13 = scmp.lt.s32.totalorder %s12, 15
      %s14 = scalar_select %p13, %s12, 15
      %s15 = scalar_lea.vmem %s0, %s14
      %s16 = sadd.s32 0, 0
      %s17 = smul.u32 16, %s16
    $region5: #{global_mean_pool.1} parent=1 // pred_fallthru
      _
    // Predicated region
    $region6: #{global_mean_pool.1} parent=1 // pred_check
      _
    $region7: #{global_mean_pool.1} parent=1 // pred_check_branch
      %19 = sbr.rel (0) target = $region9
    $region8: #{global_mean_pool.1} parent=1 // pred_region
      _
    $region9: #{global_mean_pool.1} parent=1 // pred_fallthru
      _
    // Predicated region
    $region10: #{global_mean_pool.1} parent=1 // pred_check
      _
    $region11: #{global_mean_pool.1} parent=1 // pred_check_branch
      %21 = sbr.rel (0) target = $region13
    $region12: #{global_mean_pool.1} parent=1 // pred_region
      %s22 = sadd.s32 0, 0
      %s23 = smul.u32 256, %s22
      %p24 = scmp.lt.s32.totalorder %s23, 255
      %s25 = scalar_select %p24, %s23, 255
      %s26 = smul.addr %s25, 8
      %s27 = scalar_lea.vmem %s2, %s26
      %s28 = sadd.s32 0, 0
      %s29 = smul.u32 256, %s28
    $region13: #{global_mean_pool.1} parent=1 // pred_fallthru
      _
    %s30 = sadd.s32 0, 0
    %s31 = smul.u32 16, %s30
    %p32 = scmp.lt.s32.totalorder %s31, 15
    %s33 = scalar_select %p32, %s31, 15
    %s34 = scalar_lea.vmem %s0, %s33
    %s35 = sadd.s32 0, 0
    %s36 = smul.u32 256, %s35
    %p37 = scmp.lt.s32.totalorder %s36, 255
    %s38 = scalar_select %p37, %s36, 255
    %s39 = smul.addr %s38, 8
    %s40 = scalar_lea.vmem %s2, %s39
    %s41 = sadd.s32 0, 0
    %s42 = smul.u32 16, %s41
    %p43 = scmp.lt.s32.totalorder %s42, 15
    %s44 = scalar_select %p43, %s42, 15
    %s45 = scalar_lea.vmem %s0, %s44
    %s46 = sadd.s32 0, 0
    %s47 = smul.u32 16, %s46
    %s48 = sadd.s32 0, 0
    %s49 = smul.u32 256, %s48
    %p50 = scmp.lt.s32.totalorder %s49, 255
    %s51 = scalar_select %p50, %s49, 255
    %s52 = smul.addr %s51, 8
    %s53 = scalar_lea.vmem %s2, %s52
    %s54 = sadd.s32 0, 0
    %s55 = smul.u32 256, %s54
    %p56 = scmp.eq.s32.totalorder 0, 0
    // Predicated region
    $region14: #{global_mean_pool.1} parent=1 // pred_check
      %p57 = pneg %p56
    $region15: #{global_mean_pool.1} parent=1 // pred_check_branch
      %59 = sbr.rel (%p57) target = $region17
    $region16: #{global_mean_pool.1} parent=1 // pred_region
      %vm60 = vcmask 261120
      %61 = vst.msk [vmem:[#allocation2] sm:$0xff] %vm60, 0.0
    $region17: #{global_mean_pool.1} parent=1 // pred_fallthru
      _
    %v62 = vld [vmem:[%s45] sm:$0xff]
    %v63 = vld [vmem:[%s45 + $0x8] sm:$0xff]
    %v64 = vlaneseq
    %v65 = vshrl.u32 %v64, 7
    %v66 = vlaneseq
    %v67 = vshrl.u32 %v66, 7
    %v68 = vsub.s32 0, %v67
    %v69 = vrot.slane %v62, %v68
    %v70 = vlaneseq
    %v71 = vshrl.u32 %v70, 7
    %v72 = vsub.s32 1, %v71
    %v73 = vrot.slane %v62, %v72
    %v74 = vlaneseq
    %v75 = vshrl.u32 %v74, 7
    %v76 = vsub.s32 2, %v75
    %v77 = vrot.slane %v62, %v76
    %v78 = vlaneseq
    %v79 = vshrl.u32 %v78, 7
    %v80 = vsub.s32 3, %v79
    %v81 = vrot.slane %v62, %v80
    %v82 = vlaneseq
    %v83 = vshrl.u32 %v82, 7
    %v84 = vsub.s32 4, %v83
    %v85 = vrot.slane %v62, %v84
    %v86 = vlaneseq
    %v87 = vshrl.u32 %v86, 7
    %v88 = vsub.s32 5, %v87
    %v89 = vrot.slane %v62, %v88
    %v90 = vlaneseq
    %v91 = vshrl.u32 %v90, 7
    %v92 = vsub.s32 6, %v91
    %v93 = vrot.slane %v62, %v92
    %v94 = vlaneseq
    %v95 = vshrl.u32 %v94, 7
    %v96 = vsub.s32 7, %v95
    %v97 = vrot.slane %v62, %v96
    %v98 = vlaneseq
    %v99 = vshrl.u32 %v98, 7
    %v100 = vsub.s32 0, %v99
    %v101 = vrot.slane %v63, %v100
    %v102 = vlaneseq
    %v103 = vshrl.u32 %v102, 7
    %v104 = vsub.s32 1, %v103
    %v105 = vrot.slane %v63, %v104
    %v106 = vlaneseq
    %v107 = vshrl.u32 %v106, 7
    %v108 = vsub.s32 2, %v107
    %v109 = vrot.slane %v63, %v108
    %v110 = vlaneseq
    %v111 = vshrl.u32 %v110, 7
    %v112 = vsub.s32 3, %v111
    %v113 = vrot.slane %v63, %v112
    %v114 = vlaneseq
    %v115 = vshrl.u32 %v114, 7
    %v116 = vsub.s32 4, %v115
    %v117 = vrot.slane %v63, %v116
    %v118 = vlaneseq
    %v119 = vshrl.u32 %v118, 7
    %v120 = vsub.s32 5, %v119
    %v121 = vrot.slane %v63, %v120
    %v122 = vlaneseq
    %v123 = vshrl.u32 %v122, 7
    %v124 = vsub.s32 6, %v123
    %v125 = vrot.slane %v63, %v124
    %v126 = vlaneseq
    %v127 = vshrl.u32 %v126, 7
    %v128 = vsub.s32 7, %v127
    %v129 = vrot.slane %v63, %v128
    %vm130 = vcmp.eq.s32.totalorder %v65, %v69
    %vm131 = vcmp.eq.s32.totalorder %v65, %v73
    %vm132 = vcmp.eq.s32.totalorder %v65, %v77
    %vm133 = vcmp.eq.s32.totalorder %v65, %v81
    %vm134 = vcmp.eq.s32.totalorder %v65, %v85
    %vm135 = vcmp.eq.s32.totalorder %v65, %v89
    %vm136 = vcmp.eq.s32.totalorder %v65, %v93
    %vm137 = vcmp.eq.s32.totalorder %v65, %v97
    %vm138 = vcmp.eq.s32.totalorder %v65, %v101
    %vm139 = vcmp.eq.s32.totalorder %v65, %v105
    %vm140 = vcmp.eq.s32.totalorder %v65, %v109
    %vm141 = vcmp.eq.s32.totalorder %v65, %v113
    %vm142 = vcmp.eq.s32.totalorder %v65, %v117
    %vm143 = vcmp.eq.s32.totalorder %v65, %v121
    %vm144 = vcmp.eq.s32.totalorder %v65, %v125
    %vm145 = vcmp.eq.s32.totalorder %v65, %v129
    %v146 = vsel %vm130, 1, 0
    %v147 = vsel %vm131, 1, 0
    %v148 = vsel %vm132, 1, 0
    %v149 = vsel %vm133, 1, 0
    %v150 = vsel %vm134, 1, 0
    %v151 = vsel %vm135, 1, 0
    %v152 = vsel %vm136, 1, 0
    %v153 = vsel %vm137, 1, 0
    %v154 = vsel %vm138, 1, 0
    %v155 = vsel %vm139, 1, 0
    %v156 = vsel %vm140, 1, 0
    %v157 = vsel %vm141, 1, 0
    %v158 = vsel %vm142, 1, 0
    %v159 = vsel %vm143, 1, 0
    %v160 = vsel %vm144, 1, 0
    %v161 = vsel %vm145, 1, 0
    %v162 = vcvt.s32.f32 %v146
    %v163 = vcvt.s32.f32 %v147
    %v164 = vcvt.s32.f32 %v148
    %v165 = vcvt.s32.f32 %v149
    %v166 = vcvt.s32.f32 %v150
    %v167 = vcvt.s32.f32 %v151
    %v168 = vcvt.s32.f32 %v152
    %v169 = vcvt.s32.f32 %v153
    %v170 = vcvt.s32.f32 %v154
    %v171 = vcvt.s32.f32 %v155
    %v172 = vcvt.s32.f32 %v156
    %v173 = vcvt.s32.f32 %v157
    %v174 = vcvt.s32.f32 %v158
    %v175 = vcvt.s32.f32 %v159
    %v176 = vcvt.s32.f32 %v160
    %v177 = vcvt.s32.f32 %v161
    %v178 = vld [vmem:[#allocation2] sm:$0xff]
    %v179 = vld [vmem:[%s53] sm:$0xff]
    %v180 = vld [vmem:[%s53 + $0x8] sm:$0xff]
    %v181 = vld [vmem:[%s53 + $0x10] sm:$0xff]
    %v182 = vld [vmem:[%s53 + $0x18] sm:$0xff]
    %v183 = vld [vmem:[%s53 + $0x20] sm:$0xff]
    %v184 = vld [vmem:[%s53 + $0x28] sm:$0xff]
    %v185 = vld [vmem:[%s53 + $0x30] sm:$0xff]
    %v186 = vld [vmem:[%s53 + $0x38] sm:$0xff]
    %v187 = vld [vmem:[%s53 + $0x40] sm:$0xff]
    %v188 = vld [vmem:[%s53 + $0x48] sm:$0xff]
    %v189 = vld [vmem:[%s53 + $0x50] sm:$0xff]
    %v190 = vld [vmem:[%s53 + $0x58] sm:$0xff]
    %v191 = vld [vmem:[%s53 + $0x60] sm:$0xff]
    %v192 = vld [vmem:[%s53 + $0x68] sm:$0xff]
    %v193 = vld [vmem:[%s53 + $0x70] sm:$0xff]
    %v194 = vld [vmem:[%s53 + $0x78] sm:$0xff]
    %v195 = vld [vmem:[%s53 + $0x80] sm:$0xff]
    %v196 = vld [vmem:[%s53 + $0x88] sm:$0xff]
    %v197 = vld [vmem:[%s53 + $0x90] sm:$0xff]
    %v198 = vld [vmem:[%s53 + $0x98] sm:$0xff]
    %v199 = vld [vmem:[%s53 + $0xa0] sm:$0xff]
    %v200 = vld [vmem:[%s53 + $0xa8] sm:$0xff]
    %v201 = vld [vmem:[%s53 + $0xb0] sm:$0xff]
    %v202 = vld [vmem:[%s53 + $0xb8] sm:$0xff]
    %v203 = vld [vmem:[%s53 + $0xc0] sm:$0xff]
    %v204 = vld [vmem:[%s53 + $0xc8] sm:$0xff]
    %v205 = vld [vmem:[%s53 + $0xd0] sm:$0xff]
    %v206 = vld [vmem:[%s53 + $0xd8] sm:$0xff]
    %v207 = vld [vmem:[%s53 + $0xe0] sm:$0xff]
    %v208 = vld [vmem:[%s53 + $0xe8] sm:$0xff]
    %v209 = vld [vmem:[%s53 + $0xf0] sm:$0xff]
    %v210 = vld [vmem:[%s53 + $0xf8] sm:$0xff]
    %v211 = vld [vmem:[%s53 + $0x100] sm:$0xff]
    %v212 = vld [vmem:[%s53 + $0x108] sm:$0xff]
    %v213 = vld [vmem:[%s53 + $0x110] sm:$0xff]
    %v214 = vld [vmem:[%s53 + $0x118] sm:$0xff]
    %v215 = vld [vmem:[%s53 + $0x120] sm:$0xff]
    %v216 = vld [vmem:[%s53 + $0x128] sm:$0xff]
    %v217 = vld [vmem:[%s53 + $0x130] sm:$0xff]
    %v218 = vld [vmem:[%s53 + $0x138] sm:$0xff]
    %v219 = vld [vmem:[%s53 + $0x140] sm:$0xff]
    %v220 = vld [vmem:[%s53 + $0x148] sm:$0xff]
    %v221 = vld [vmem:[%s53 + $0x150] sm:$0xff]
    %v222 = vld [vmem:[%s53 + $0x158] sm:$0xff]
    %v223 = vld [vmem:[%s53 + $0x160] sm:$0xff]
    %v224 = vld [vmem:[%s53 + $0x168] sm:$0xff]
    %v225 = vld [vmem:[%s53 + $0x170] sm:$0xff]
    %v226 = vld [vmem:[%s53 + $0x178] sm:$0xff]
    %v227 = vld [vmem:[%s53 + $0x180] sm:$0xff]
    %v228 = vld [vmem:[%s53 + $0x188] sm:$0xff]
    %v229 = vld [vmem:[%s53 + $0x190] sm:$0xff]
    %v230 = vld [vmem:[%s53 + $0x198] sm:$0xff]
    %v231 = vld [vmem:[%s53 + $0x1a0] sm:$0xff]
    %v232 = vld [vmem:[%s53 + $0x1a8] sm:$0xff]
    %v233 = vld [vmem:[%s53 + $0x1b0] sm:$0xff]
    %v234 = vld [vmem:[%s53 + $0x1b8] sm:$0xff]
    %v235 = vld [vmem:[%s53 + $0x1c0] sm:$0xff]
    %v236 = vld [vmem:[%s53 + $0x1c8] sm:$0xff]
    %v237 = vld [vmem:[%s53 + $0x1d0] sm:$0xff]
    %v238 = vld [vmem:[%s53 + $0x1d8] sm:$0xff]
    %v239 = vld [vmem:[%s53 + $0x1e0] sm:$0xff]
    %v240 = vld [vmem:[%s53 + $0x1e8] sm:$0xff]
    %v241 = vld [vmem:[%s53 + $0x1f0] sm:$0xff]
    %v242 = vld [vmem:[%s53 + $0x1f8] sm:$0xff]
    %v243 = vld [vmem:[%s53 + $0x200] sm:$0xff]
    %v244 = vld [vmem:[%s53 + $0x208] sm:$0xff]
    %v245 = vld [vmem:[%s53 + $0x210] sm:$0xff]
    %v246 = vld [vmem:[%s53 + $0x218] sm:$0xff]
    %v247 = vld [vmem:[%s53 + $0x220] sm:$0xff]
    %v248 = vld [vmem:[%s53 + $0x228] sm:$0xff]
    %v249 = vld [vmem:[%s53 + $0x230] sm:$0xff]
    %v250 = vld [vmem:[%s53 + $0x238] sm:$0xff]
    %v251 = vld [vmem:[%s53 + $0x240] sm:$0xff]
    %v252 = vld [vmem:[%s53 + $0x248] sm:$0xff]
    %v253 = vld [vmem:[%s53 + $0x250] sm:$0xff]
    %v254 = vld [vmem:[%s53 + $0x258] sm:$0xff]
    %v255 = vld [vmem:[%s53 + $0x260] sm:$0xff]
    %v256 = vld [vmem:[%s53 + $0x268] sm:$0xff]
    %v257 = vld [vmem:[%s53 + $0x270] sm:$0xff]
    %v258 = vld [vmem:[%s53 + $0x278] sm:$0xff]
    %v259 = vld [vmem:[%s53 + $0x280] sm:$0xff]
    %v260 = vld [vmem:[%s53 + $0x288] sm:$0xff]
    %v261 = vld [vmem:[%s53 + $0x290] sm:$0xff]
    %v262 = vld [vmem:[%s53 + $0x298] sm:$0xff]
    %v263 = vld [vmem:[%s53 + $0x2a0] sm:$0xff]
    %v264 = vld [vmem:[%s53 + $0x2a8] sm:$0xff]
    %v265 = vld [vmem:[%s53 + $0x2b0] sm:$0xff]
    %v266 = vld [vmem:[%s53 + $0x2b8] sm:$0xff]
    %v267 = vld [vmem:[%s53 + $0x2c0] sm:$0xff]
    %v268 = vld [vmem:[%s53 + $0x2c8] sm:$0xff]
    %v269 = vld [vmem:[%s53 + $0x2d0] sm:$0xff]
    %v270 = vld [vmem:[%s53 + $0x2d8] sm:$0xff]
    %v271 = vld [vmem:[%s53 + $0x2e0] sm:$0xff]
    %v272 = vld [vmem:[%s53 + $0x2e8] sm:$0xff]
    %v273 = vld [vmem:[%s53 + $0x2f0] sm:$0xff]
    %v274 = vld [vmem:[%s53 + $0x2f8] sm:$0xff]
    %v275 = vld [vmem:[%s53 + $0x300] sm:$0xff]
    %v276 = vld [vmem:[%s53 + $0x308] sm:$0xff]
    %v277 = vld [vmem:[%s53 + $0x310] sm:$0xff]
    %v278 = vld [vmem:[%s53 + $0x318] sm:$0xff]
    %v279 = vld [vmem:[%s53 + $0x320] sm:$0xff]
    %v280 = vld [vmem:[%s53 + $0x328] sm:$0xff]
    %v281 = vld [vmem:[%s53 + $0x330] sm:$0xff]
    %v282 = vld [vmem:[%s53 + $0x338] sm:$0xff]
    %v283 = vld [vmem:[%s53 + $0x340] sm:$0xff]
    %v284 = vld [vmem:[%s53 + $0x348] sm:$0xff]
    %v285 = vld [vmem:[%s53 + $0x350] sm:$0xff]
    %v286 = vld [vmem:[%s53 + $0x358] sm:$0xff]
    %v287 = vld [vmem:[%s53 + $0x360] sm:$0xff]
    %v288 = vld [vmem:[%s53 + $0x368] sm:$0xff]
    %v289 = vld [vmem:[%s53 + $0x370] sm:$0xff]
    %v290 = vld [vmem:[%s53 + $0x378] sm:$0xff]
    %v291 = vld [vmem:[%s53 + $0x380] sm:$0xff]
    %v292 = vld [vmem:[%s53 + $0x388] sm:$0xff]
    %v293 = vld [vmem:[%s53 + $0x390] sm:$0xff]
    %v294 = vld [vmem:[%s53 + $0x398] sm:$0xff]
    %v295 = vld [vmem:[%s53 + $0x3a0] sm:$0xff]
    %v296 = vld [vmem:[%s53 + $0x3a8] sm:$0xff]
    %v297 = vld [vmem:[%s53 + $0x3b0] sm:$0xff]
    %v298 = vld [vmem:[%s53 + $0x3b8] sm:$0xff]
    %v299 = vld [vmem:[%s53 + $0x3c0] sm:$0xff]
    %v300 = vld [vmem:[%s53 + $0x3c8] sm:$0xff]
    %v301 = vld [vmem:[%s53 + $0x3d0] sm:$0xff]
    %v302 = vld [vmem:[%s53 + $0x3d8] sm:$0xff]
    %v303 = vld [vmem:[%s53 + $0x3e0] sm:$0xff]
    %v304 = vld [vmem:[%s53 + $0x3e8] sm:$0xff]
    %v305 = vld [vmem:[%s53 + $0x3f0] sm:$0xff]
    %v306 = vld [vmem:[%s53 + $0x3f8] sm:$0xff]
    %v307 = vld [vmem:[%s53 + $0x400] sm:$0xff]
    %v308 = vld [vmem:[%s53 + $0x408] sm:$0xff]
    %v309 = vld [vmem:[%s53 + $0x410] sm:$0xff]
    %v310 = vld [vmem:[%s53 + $0x418] sm:$0xff]
    %v311 = vld [vmem:[%s53 + $0x420] sm:$0xff]
    %v312 = vld [vmem:[%s53 + $0x428] sm:$0xff]
    %v313 = vld [vmem:[%s53 + $0x430] sm:$0xff]
    %v314 = vld [vmem:[%s53 + $0x438] sm:$0xff]
    %v315 = vld [vmem:[%s53 + $0x440] sm:$0xff]
    %v316 = vld [vmem:[%s53 + $0x448] sm:$0xff]
    %v317 = vld [vmem:[%s53 + $0x450] sm:$0xff]
    %v318 = vld [vmem:[%s53 + $0x458] sm:$0xff]
    %v319 = vld [vmem:[%s53 + $0x460] sm:$0xff]
    %v320 = vld [vmem:[%s53 + $0x468] sm:$0xff]
    %v321 = vld [vmem:[%s53 + $0x470] sm:$0xff]
    %v322 = vld [vmem:[%s53 + $0x478] sm:$0xff]
    %v323 = vld [vmem:[%s53 + $0x480] sm:$0xff]
    %v324 = vld [vmem:[%s53 + $0x488] sm:$0xff]
    %v325 = vld [vmem:[%s53 + $0x490] sm:$0xff]
    %v326 = vld [vmem:[%s53 + $0x498] sm:$0xff]
    %v327 = vld [vmem:[%s53 + $0x4a0] sm:$0xff]
    %v328 = vld [vmem:[%s53 + $0x4a8] sm:$0xff]
    %v329 = vld [vmem:[%s53 + $0x4b0] sm:$0xff]
    %v330 = vld [vmem:[%s53 + $0x4b8] sm:$0xff]
    %v331 = vld [vmem:[%s53 + $0x4c0] sm:$0xff]
    %v332 = vld [vmem:[%s53 + $0x4c8] sm:$0xff]
    %v333 = vld [vmem:[%s53 + $0x4d0] sm:$0xff]
    %v334 = vld [vmem:[%s53 + $0x4d8] sm:$0xff]
    %v335 = vld [vmem:[%s53 + $0x4e0] sm:$0xff]
    %v336 = vld [vmem:[%s53 + $0x4e8] sm:$0xff]
    %v337 = vld [vmem:[%s53 + $0x4f0] sm:$0xff]
    %v338 = vld [vmem:[%s53 + $0x4f8] sm:$0xff]
    %v339 = vld [vmem:[%s53 + $0x500] sm:$0xff]
    %v340 = vld [vmem:[%s53 + $0x508] sm:$0xff]
    %v341 = vld [vmem:[%s53 + $0x510] sm:$0xff]
    %v342 = vld [vmem:[%s53 + $0x518] sm:$0xff]
    %v343 = vld [vmem:[%s53 + $0x520] sm:$0xff]
    %v344 = vld [vmem:[%s53 + $0x528] sm:$0xff]
    %v345 = vld [vmem:[%s53 + $0x530] sm:$0xff]
    %v346 = vld [vmem:[%s53 + $0x538] sm:$0xff]
    %v347 = vld [vmem:[%s53 + $0x540] sm:$0xff]
    %v348 = vld [vmem:[%s53 + $0x548] sm:$0xff]
    %v349 = vld [vmem:[%s53 + $0x550] sm:$0xff]
    %v350 = vld [vmem:[%s53 + $0x558] sm:$0xff]
    %v351 = vld [vmem:[%s53 + $0x560] sm:$0xff]
    %v352 = vld [vmem:[%s53 + $0x568] sm:$0xff]
    %v353 = vld [vmem:[%s53 + $0x570] sm:$0xff]
    %v354 = vld [vmem:[%s53 + $0x578] sm:$0xff]
    %v355 = vld [vmem:[%s53 + $0x580] sm:$0xff]
    %v356 = vld [vmem:[%s53 + $0x588] sm:$0xff]
    %v357 = vld [vmem:[%s53 + $0x590] sm:$0xff]
    %v358 = vld [vmem:[%s53 + $0x598] sm:$0xff]
    %v359 = vld [vmem:[%s53 + $0x5a0] sm:$0xff]
    %v360 = vld [vmem:[%s53 + $0x5a8] sm:$0xff]
    %v361 = vld [vmem:[%s53 + $0x5b0] sm:$0xff]
    %v362 = vld [vmem:[%s53 + $0x5b8] sm:$0xff]
    %v363 = vld [vmem:[%s53 + $0x5c0] sm:$0xff]
    %v364 = vld [vmem:[%s53 + $0x5c8] sm:$0xff]
    %v365 = vld [vmem:[%s53 + $0x5d0] sm:$0xff]
    %v366 = vld [vmem:[%s53 + $0x5d8] sm:$0xff]
    %v367 = vld [vmem:[%s53 + $0x5e0] sm:$0xff]
    %v368 = vld [vmem:[%s53 + $0x5e8] sm:$0xff]
    %v369 = vld [vmem:[%s53 + $0x5f0] sm:$0xff]
    %v370 = vld [vmem:[%s53 + $0x5f8] sm:$0xff]
    %v371 = vld [vmem:[%s53 + $0x600] sm:$0xff]
    %v372 = vld [vmem:[%s53 + $0x608] sm:$0xff]
    %v373 = vld [vmem:[%s53 + $0x610] sm:$0xff]
    %v374 = vld [vmem:[%s53 + $0x618] sm:$0xff]
    %v375 = vld [vmem:[%s53 + $0x620] sm:$0xff]
    %v376 = vld [vmem:[%s53 + $0x628] sm:$0xff]
    %v377 = vld [vmem:[%s53 + $0x630] sm:$0xff]
    %v378 = vld [vmem:[%s53 + $0x638] sm:$0xff]
    %v379 = vld [vmem:[%s53 + $0x640] sm:$0xff]
    %v380 = vld [vmem:[%s53 + $0x648] sm:$0xff]
    %v381 = vld [vmem:[%s53 + $0x650] sm:$0xff]
    %v382 = vld [vmem:[%s53 + $0x658] sm:$0xff]
    %v383 = vld [vmem:[%s53 + $0x660] sm:$0xff]
    %v384 = vld [vmem:[%s53 + $0x668] sm:$0xff]
    %v385 = vld [vmem:[%s53 + $0x670] sm:$0xff]
    %v386 = vld [vmem:[%s53 + $0x678] sm:$0xff]
    %v387 = vld [vmem:[%s53 + $0x680] sm:$0xff]
    %v388 = vld [vmem:[%s53 + $0x688] sm:$0xff]
    %v389 = vld [vmem:[%s53 + $0x690] sm:$0xff]
    %v390 = vld [vmem:[%s53 + $0x698] sm:$0xff]
    %v391 = vld [vmem:[%s53 + $0x6a0] sm:$0xff]
    %v392 = vld [vmem:[%s53 + $0x6a8] sm:$0xff]
    %v393 = vld [vmem:[%s53 + $0x6b0] sm:$0xff]
    %v394 = vld [vmem:[%s53 + $0x6b8] sm:$0xff]
    %v395 = vld [vmem:[%s53 + $0x6c0] sm:$0xff]
    %v396 = vld [vmem:[%s53 + $0x6c8] sm:$0xff]
    %v397 = vld [vmem:[%s53 + $0x6d0] sm:$0xff]
    %v398 = vld [vmem:[%s53 + $0x6d8] sm:$0xff]
    %v399 = vld [vmem:[%s53 + $0x6e0] sm:$0xff]
    %v400 = vld [vmem:[%s53 + $0x6e8] sm:$0xff]
    %v401 = vld [vmem:[%s53 + $0x6f0] sm:$0xff]
    %v402 = vld [vmem:[%s53 + $0x6f8] sm:$0xff]
    %v403 = vld [vmem:[%s53 + $0x700] sm:$0xff]
    %v404 = vld [vmem:[%s53 + $0x708] sm:$0xff]
    %v405 = vld [vmem:[%s53 + $0x710] sm:$0xff]
    %v406 = vld [vmem:[%s53 + $0x718] sm:$0xff]
    %v407 = vld [vmem:[%s53 + $0x720] sm:$0xff]
    %v408 = vld [vmem:[%s53 + $0x728] sm:$0xff]
    %v409 = vld [vmem:[%s53 + $0x730] sm:$0xff]
    %v410 = vld [vmem:[%s53 + $0x738] sm:$0xff]
    %v411 = vld [vmem:[%s53 + $0x740] sm:$0xff]
    %v412 = vld [vmem:[%s53 + $0x748] sm:$0xff]
    %v413 = vld [vmem:[%s53 + $0x750] sm:$0xff]
    %v414 = vld [vmem:[%s53 + $0x758] sm:$0xff]
    %v415 = vld [vmem:[%s53 + $0x760] sm:$0xff]
    %v416 = vld [vmem:[%s53 + $0x768] sm:$0xff]
    %v417 = vld [vmem:[%s53 + $0x770] sm:$0xff]
    %v418 = vld [vmem:[%s53 + $0x778] sm:$0xff]
    %v419 = vld [vmem:[%s53 + $0x780] sm:$0xff]
    %v420 = vld [vmem:[%s53 + $0x788] sm:$0xff]
    %v421 = vld [vmem:[%s53 + $0x790] sm:$0xff]
    %v422 = vld [vmem:[%s53 + $0x798] sm:$0xff]
    %v423 = vld [vmem:[%s53 + $0x7a0] sm:$0xff]
    %v424 = vld [vmem:[%s53 + $0x7a8] sm:$0xff]
    %v425 = vld [vmem:[%s53 + $0x7b0] sm:$0xff]
    %v426 = vld [vmem:[%s53 + $0x7b8] sm:$0xff]
    %v427 = vld [vmem:[%s53 + $0x7c0] sm:$0xff]
    %v428 = vld [vmem:[%s53 + $0x7c8] sm:$0xff]
    %v429 = vld [vmem:[%s53 + $0x7d0] sm:$0xff]
    %v430 = vld [vmem:[%s53 + $0x7d8] sm:$0xff]
    %v431 = vld [vmem:[%s53 + $0x7e0] sm:$0xff]
    %v432 = vld [vmem:[%s53 + $0x7e8] sm:$0xff]
    %v433 = vld [vmem:[%s53 + $0x7f0] sm:$0xff]
    %v434 = vld [vmem:[%s53 + $0x7f8] sm:$0xff]
    %435 = vmatprep.subr.mxu0 0.0
    %436 = vmatpush1.msra.mxu0 %v179
    %437 = vmatprep.subr.mxu0 0.0
    %438 = vmatpush1.msra.mxu0 %v180
    %439 = vmatprep.subr.mxu0 0.0
    %440 = vmatpush1.msra.mxu0 %v181
    %441 = vmatprep.subr.mxu0 0.0
    %442 = vmatpush1.msra.mxu0 %v182
    %443 = vmatprep.subr.mxu0 0.0
    %444 = vmatpush1.msra.mxu0 %v183
    %445 = vmatprep.subr.mxu0 0.0
    %446 = vmatpush1.msra.mxu0 %v184
    %447 = vmatprep.subr.mxu0 0.0
    %448 = vmatpush1.msra.mxu0 %v185
    %449 = vmatprep.subr.mxu0 0.0
    %450 = vmatpush1.msra.mxu0 %v186
    %451 = vmatprep.subr.mxu0 0.0
    %452 = vmatpush1.msra.mxu0 %v187
    %453 = vmatprep.subr.mxu0 0.0
    %454 = vmatpush1.msra.mxu0 %v188
    %455 = vmatprep.subr.mxu0 0.0
    %456 = vmatpush1.msra.mxu0 %v189
    %457 = vmatprep.subr.mxu0 0.0
    %458 = vmatpush1.msra.mxu0 %v190
    %459 = vmatprep.subr.mxu0 0.0
    %460 = vmatpush1.msra.mxu0 %v191
    %461 = vmatprep.subr.mxu0 0.0
    %462 = vmatpush1.msra.mxu0 %v192
    %463 = vmatprep.subr.mxu0 0.0
    %464 = vmatpush1.msra.mxu0 %v193
    %465 = vmatprep.subr.mxu0 0.0
    %466 = vmatpush1.msra.mxu0 %v194
    %467 = vmatprep.subr.mxu0 0.0
    %468 = vmatpush1.msra.mxu0 %v195
    %469 = vmatprep.subr.mxu0 0.0
    %470 = vmatpush1.msra.mxu0 %v196
    %471 = vmatprep.subr.mxu0 0.0
    %472 = vmatpush1.msra.mxu0 %v197
    %473 = vmatprep.subr.mxu0 0.0
    %474 = vmatpush1.msra.mxu0 %v198
    %475 = vmatprep.subr.mxu0 0.0
    %476 = vmatpush1.msra.mxu0 %v199
    %477 = vmatprep.subr.mxu0 0.0
    %478 = vmatpush1.msra.mxu0 %v200
    %479 = vmatprep.subr.mxu0 0.0
    %480 = vmatpush1.msra.mxu0 %v201
    %481 = vmatprep.subr.mxu0 0.0
    %482 = vmatpush1.msra.mxu0 %v202
    %483 = vmatprep.subr.mxu0 0.0
    %484 = vmatpush1.msra.mxu0 %v203
    %485 = vmatprep.subr.mxu0 0.0
    %486 = vmatpush1.msra.mxu0 %v204
    %487 = vmatprep.subr.mxu0 0.0
    %488 = vmatpush1.msra.mxu0 %v205
    %489 = vmatprep.subr.mxu0 0.0
    %490 = vmatpush1.msra.mxu0 %v206
    %491 = vmatprep.subr.mxu0 0.0
    %492 = vmatpush1.msra.mxu0 %v207
    %493 = vmatprep.subr.mxu0 0.0
    %494 = vmatpush1.msra.mxu0 %v208
    %495 = vmatprep.subr.mxu0 0.0
    %496 = vmatpush1.msra.mxu0 %v209
    %497 = vmatprep.subr.mxu0 0.0
    %498 = vmatpush1.msra.mxu0 %v210
    %499 = vmatprep.mubr.f32.mxu0 %v163
    %500 = vmatmul.mubr.f32.gmra.mrb[0].mxu0 %v162
    %v501 = vpop.f32.mrb[0].mxu0
    %v502 = vadd.f32 0.0, %v501
    %v503 = vpop.f32.mrb[0].mxu0
    %504 = vdwg.mxu0
    %505 = vmatprep.subr.mxu0 0.0
    %506 = vmatpush1.msra.mxu0 %v211
    %507 = vmatprep.subr.mxu0 0.0
    %508 = vmatpush1.msra.mxu0 %v212
    %509 = vmatprep.subr.mxu0 0.0
    %510 = vmatpush1.msra.mxu0 %v213
    %511 = vmatprep.subr.mxu0 0.0
    %512 = vmatpush1.msra.mxu0 %v214
    %513 = vmatprep.subr.mxu0 0.0
    %514 = vmatpush1.msra.mxu0 %v215
    %515 = vmatprep.subr.mxu0 0.0
    %516 = vmatpush1.msra.mxu0 %v216
    %517 = vmatprep.subr.mxu0 0.0
    %518 = vmatpush1.msra.mxu0 %v217
    %519 = vmatprep.subr.mxu0 0.0
    %520 = vmatpush1.msra.mxu0 %v218
    %521 = vmatprep.subr.mxu0 0.0
    %522 = vmatpush1.msra.mxu0 %v219
    %523 = vmatprep.subr.mxu0 0.0
    %524 = vmatpush1.msra.mxu0 %v220
    %525 = vmatprep.subr.mxu0 0.0
    %526 = vmatpush1.msra.mxu0 %v221
    %527 = vmatprep.subr.mxu0 0.0
    %528 = vmatpush1.msra.mxu0 %v222
    %529 = vmatprep.subr.mxu0 0.0
    %530 = vmatpush1.msra.mxu0 %v223
    %531 = vmatprep.subr.mxu0 0.0
    %532 = vmatpush1.msra.mxu0 %v224
    %533 = vmatprep.subr.mxu0 0.0
    %534 = vmatpush1.msra.mxu0 %v225
    %535 = vmatprep.subr.mxu0 0.0
    %536 = vmatpush1.msra.mxu0 %v226
    %537 = vmatprep.subr.mxu0 0.0
    %538 = vmatpush1.msra.mxu0 %v227
    %539 = vmatprep.subr.mxu0 0.0
    %540 = vmatpush1.msra.mxu0 %v228
    %541 = vmatprep.subr.mxu0 0.0
    %542 = vmatpush1.msra.mxu0 %v229
    %543 = vmatprep.subr.mxu0 0.0
    %544 = vmatpush1.msra.mxu0 %v230
    %545 = vmatprep.subr.mxu0 0.0
    %546 = vmatpush1.msra.mxu0 %v231
    %547 = vmatprep.subr.mxu0 0.0
    %548 = vmatpush1.msra.mxu0 %v232
    %549 = vmatprep.subr.mxu0 0.0
    %550 = vmatpush1.msra.mxu0 %v233
    %551 = vmatprep.subr.mxu0 0.0
    %552 = vmatpush1.msra.mxu0 %v234
    %553 = vmatprep.subr.mxu0 0.0
    %554 = vmatpush1.msra.mxu0 %v235
    %555 = vmatprep.subr.mxu0 0.0
    %556 = vmatpush1.msra.mxu0 %v236
    %557 = vmatprep.subr.mxu0 0.0
    %558 = vmatpush1.msra.mxu0 %v237
    %559 = vmatprep.subr.mxu0 0.0
    %560 = vmatpush1.msra.mxu0 %v238
    %561 = vmatprep.subr.mxu0 0.0
    %562 = vmatpush1.msra.mxu0 %v239
    %563 = vmatprep.subr.mxu0 0.0
    %564 = vmatpush1.msra.mxu0 %v240
    %565 = vmatprep.subr.mxu0 0.0
    %566 = vmatpush1.msra.mxu0 %v241
    %567 = vmatprep.subr.mxu0 0.0
    %568 = vmatpush1.msra.mxu0 %v242
    %569 = vmatprep.mubr.f32.mxu0 %v165
    %570 = vmatmul.mubr.f32.gmra.mrb[0].mxu0 %v164
    %v571 = vpop.f32.mrb[0].mxu0
    %v572 = vadd.f32 %v502, %v571
    %v573 = vpop.f32.mrb[0].mxu0
    %574 = vdwg.mxu0
    %575 = vmatprep.subr.mxu0 0.0
    %576 = vmatpush1.msra.mxu0 %v243
    %577 = vmatprep.subr.mxu0 0.0
    %578 = vmatpush1.msra.mxu0 %v244
    %579 = vmatprep.subr.mxu0 0.0
    %580 = vmatpush1.msra.mxu0 %v245
    %581 = vmatprep.subr.mxu0 0.0
    %582 = vmatpush1.msra.mxu0 %v246
    %583 = vmatprep.subr.mxu0 0.0
    %584 = vmatpush1.msra.mxu0 %v247
    %585 = vmatprep.subr.mxu0 0.0
    %586 = vmatpush1.msra.mxu0 %v248
    %587 = vmatprep.subr.mxu0 0.0
    %588 = vmatpush1.msra.mxu0 %v249
    %589 = vmatprep.subr.mxu0 0.0
    %590 = vmatpush1.msra.mxu0 %v250
    %591 = vmatprep.subr.mxu0 0.0
    %592 = vmatpush1.msra.mxu0 %v251
    %593 = vmatprep.subr.mxu0 0.0
    %594 = vmatpush1.msra.mxu0 %v252
    %595 = vmatprep.subr.mxu0 0.0
    %596 = vmatpush1.msra.mxu0 %v253
    %597 = vmatprep.subr.mxu0 0.0
    %598 = vmatpush1.msra.mxu0 %v254
    %599 = vmatprep.subr.mxu0 0.0
    %600 = vmatpush1.msra.mxu0 %v255
    %601 = vmatprep.subr.mxu0 0.0
    %602 = vmatpush1.msra.mxu0 %v256
    %603 = vmatprep.subr.mxu0 0.0
    %604 = vmatpush1.msra.mxu0 %v257
    %605 = vmatprep.subr.mxu0 0.0
    %606 = vmatpush1.msra.mxu0 %v258
    %607 = vmatprep.subr.mxu0 0.0
    %608 = vmatpush1.msra.mxu0 %v259
    %609 = vmatprep.subr.mxu0 0.0
    %610 = vmatpush1.msra.mxu0 %v260
    %611 = vmatprep.subr.mxu0 0.0
    %612 = vmatpush1.msra.mxu0 %v261
    %613 = vmatprep.subr.mxu0 0.0
    %614 = vmatpush1.msra.mxu0 %v262
    %615 = vmatprep.subr.mxu0 0.0
    %616 = vmatpush1.msra.mxu0 %v263
    %617 = vmatprep.subr.mxu0 0.0
    %618 = vmatpush1.msra.mxu0 %v264
    %619 = vmatprep.subr.mxu0 0.0
    %620 = vmatpush1.msra.mxu0 %v265
    %621 = vmatprep.subr.mxu0 0.0
    %622 = vmatpush1.msra.mxu0 %v266
    %623 = vmatprep.subr.mxu0 0.0
    %624 = vmatpush1.msra.mxu0 %v267
    %625 = vmatprep.subr.mxu0 0.0
    %626 = vmatpush1.msra.mxu0 %v268
    %627 = vmatprep.subr.mxu0 0.0
    %628 = vmatpush1.msra.mxu0 %v269
    %629 = vmatprep.subr.mxu0 0.0
    %630 = vmatpush1.msra.mxu0 %v270
    %631 = vmatprep.subr.mxu0 0.0
    %632 = vmatpush1.msra.mxu0 %v271
    %633 = vmatprep.subr.mxu0 0.0
    %634 = vmatpush1.msra.mxu0 %v272
    %635 = vmatprep.subr.mxu0 0.0
    %636 = vmatpush1.msra.mxu0 %v273
    %637 = vmatprep.subr.mxu0 0.0
    %638 = vmatpush1.msra.mxu0 %v274
    %639 = vmatprep.mubr.f32.mxu0 %v167
    %640 = vmatmul.mubr.f32.gmra.mrb[0].mxu0 %v166
    %v641 = vpop.f32.mrb[0].mxu0
    %v642 = vadd.f32 %v572, %v641
    %v643 = vpop.f32.mrb[0].mxu0
    %644 = vdwg.mxu0
    %645 = vmatprep.subr.mxu0 0.0
    %646 = vmatpush1.msra.mxu0 %v275
    %647 = vmatprep.subr.mxu0 0.0
    %648 = vmatpush1.msra.mxu0 %v276
    %649 = vmatprep.subr.mxu0 0.0
    %650 = vmatpush1.msra.mxu0 %v277
    %651 = vmatprep.subr.mxu0 0.0
    %652 = vmatpush1.msra.mxu0 %v278
    %653 = vmatprep.subr.mxu0 0.0
    %654 = vmatpush1.msra.mxu0 %v279
    %655 = vmatprep.subr.mxu0 0.0
    %656 = vmatpush1.msra.mxu0 %v280
    %657 = vmatprep.subr.mxu0 0.0
    %658 = vmatpush1.msra.mxu0 %v281
    %659 = vmatprep.subr.mxu0 0.0
    %660 = vmatpush1.msra.mxu0 %v282
    %661 = vmatprep.subr.mxu0 0.0
    %662 = vmatpush1.msra.mxu0 %v283
    %663 = vmatprep.subr.mxu0 0.0
    %664 = vmatpush1.msra.mxu0 %v284
    %665 = vmatprep.subr.mxu0 0.0
    %666 = vmatpush1.msra.mxu0 %v285
    %667 = vmatprep.subr.mxu0 0.0
    %668 = vmatpush1.msra.mxu0 %v286
    %669 = vmatprep.subr.mxu0 0.0
    %670 = vmatpush1.msra.mxu0 %v287
    %671 = vmatprep.subr.mxu0 0.0
    %672 = vmatpush1.msra.mxu0 %v288
    %673 = vmatprep.subr.mxu0 0.0
    %674 = vmatpush1.msra.mxu0 %v289
    %675 = vmatprep.subr.mxu0 0.0
    %676 = vmatpush1.msra.mxu0 %v290
    %677 = vmatprep.subr.mxu0 0.0
    %678 = vmatpush1.msra.mxu0 %v291
    %679 = vmatprep.subr.mxu0 0.0
    %680 = vmatpush1.msra.mxu0 %v292
    %681 = vmatprep.subr.mxu0 0.0
    %682 = vmatpush1.msra.mxu0 %v293
    %683 = vmatprep.subr.mxu0 0.0
    %684 = vmatpush1.msra.mxu0 %v294
    %685 = vmatprep.subr.mxu0 0.0
    %686 = vmatpush1.msra.mxu0 %v295
    %687 = vmatprep.subr.mxu0 0.0
    %688 = vmatpush1.msra.mxu0 %v296
    %689 = vmatprep.subr.mxu0 0.0
    %690 = vmatpush1.msra.mxu0 %v297
    %691 = vmatprep.subr.mxu0 0.0
    %692 = vmatpush1.msra.mxu0 %v298
    %693 = vmatprep.subr.mxu0 0.0
    %694 = vmatpush1.msra.mxu0 %v299
    %695 = vmatprep.subr.mxu0 0.0
    %696 = vmatpush1.msra.mxu0 %v300
    %697 = vmatprep.subr.mxu0 0.0
    %698 = vmatpush1.msra.mxu0 %v301
    %699 = vmatprep.subr.mxu0 0.0
    %700 = vmatpush1.msra.mxu0 %v302
    %701 = vmatprep.subr.mxu0 0.0
    %702 = vmatpush1.msra.mxu0 %v303
    %703 = vmatprep.subr.mxu0 0.0
    %704 = vmatpush1.msra.mxu0 %v304
    %705 = vmatprep.subr.mxu0 0.0
    %706 = vmatpush1.msra.mxu0 %v305
    %707 = vmatprep.subr.mxu0 0.0
    %708 = vmatpush1.msra.mxu0 %v306
    %709 = vmatprep.mubr.f32.mxu0 %v169
    %710 = vmatmul.mubr.f32.gmra.mrb[0].mxu0 %v168
    %v711 = vpop.f32.mrb[0].mxu0
    %v712 = vadd.f32 %v642, %v711
    %v713 = vpop.f32.mrb[0].mxu0
    %714 = vdwg.mxu0
    %715 = vmatprep.subr.mxu0 0.0
    %716 = vmatpush1.msra.mxu0 %v307
    %717 = vmatprep.subr.mxu0 0.0
    %718 = vmatpush1.msra.mxu0 %v308
    %719 = vmatprep.subr.mxu0 0.0
    %720 = vmatpush1.msra.mxu0 %v309
    %721 = vmatprep.subr.mxu0 0.0
    %722 = vmatpush1.msra.mxu0 %v310
    %723 = vmatprep.subr.mxu0 0.0
    %724 = vmatpush1.msra.mxu0 %v311
    %725 = vmatprep.subr.mxu0 0.0
    %726 = vmatpush1.msra.mxu0 %v312
    %727 = vmatprep.subr.mxu0 0.0
    %728 = vmatpush1.msra.mxu0 %v313
    %729 = vmatprep.subr.mxu0 0.0
    %730 = vmatpush1.msra.mxu0 %v314
    %731 = vmatprep.subr.mxu0 0.0
    %732 = vmatpush1.msra.mxu0 %v315
    %733 = vmatprep.subr.mxu0 0.0
    %734 = vmatpush1.msra.mxu0 %v316
    %735 = vmatprep.subr.mxu0 0.0
    %736 = vmatpush1.msra.mxu0 %v317
    %737 = vmatprep.subr.mxu0 0.0
    %738 = vmatpush1.msra.mxu0 %v318
    %739 = vmatprep.subr.mxu0 0.0
    %740 = vmatpush1.msra.mxu0 %v319
    %741 = vmatprep.subr.mxu0 0.0
    %742 = vmatpush1.msra.mxu0 %v320
    %743 = vmatprep.subr.mxu0 0.0
    %744 = vmatpush1.msra.mxu0 %v321
    %745 = vmatprep.subr.mxu0 0.0
    %746 = vmatpush1.msra.mxu0 %v322
    %747 = vmatprep.subr.mxu0 0.0
    %748 = vmatpush1.msra.mxu0 %v323
    %749 = vmatprep.subr.mxu0 0.0
    %750 = vmatpush1.msra.mxu0 %v324
    %751 = vmatprep.subr.mxu0 0.0
    %752 = vmatpush1.msra.mxu0 %v325
    %753 = vmatprep.subr.mxu0 0.0
    %754 = vmatpush1.msra.mxu0 %v326
    %755 = vmatprep.subr.mxu0 0.0
    %756 = vmatpush1.msra.mxu0 %v327
    %757 = vmatprep.subr.mxu0 0.0
    %758 = vmatpush1.msra.mxu0 %v328
    %759 = vmatprep.subr.mxu0 0.0
    %760 = vmatpush1.msra.mxu0 %v329
    %761 = vmatprep.subr.mxu0 0.0
    %762 = vmatpush1.msra.mxu0 %v330
    %763 = vmatprep.subr.mxu0 0.0
    %764 = vmatpush1.msra.mxu0 %v331
    %765 = vmatprep.subr.mxu0 0.0
    %766 = vmatpush1.msra.mxu0 %v332
    %767 = vmatprep.subr.mxu0 0.0
    %768 = vmatpush1.msra.mxu0 %v333
    %769 = vmatprep.subr.mxu0 0.0
    %770 = vmatpush1.msra.mxu0 %v334
    %771 = vmatprep.subr.mxu0 0.0
    %772 = vmatpush1.msra.mxu0 %v335
    %773 = vmatprep.subr.mxu0 0.0
    %774 = vmatpush1.msra.mxu0 %v336
    %775 = vmatprep.subr.mxu0 0.0
    %776 = vmatpush1.msra.mxu0 %v337
    %777 = vmatprep.subr.mxu0 0.0
    %778 = vmatpush1.msra.mxu0 %v338
    %779 = vmatprep.mubr.f32.mxu0 %v171
    %780 = vmatmul.mubr.f32.gmra.mrb[0].mxu0 %v170
    %v781 = vpop.f32.mrb[0].mxu0
    %v782 = vadd.f32 %v712, %v781
    %v783 = vpop.f32.mrb[0].mxu0
    %784 = vdwg.mxu0
    %785 = vmatprep.subr.mxu0 0.0
    %786 = vmatpush1.msra.mxu0 %v339
    %787 = vmatprep.subr.mxu0 0.0
    %788 = vmatpush1.msra.mxu0 %v340
    %789 = vmatprep.subr.mxu0 0.0
    %790 = vmatpush1.msra.mxu0 %v341
    %791 = vmatprep.subr.mxu0 0.0
    %792 = vmatpush1.msra.mxu0 %v342
    %793 = vmatprep.subr.mxu0 0.0
    %794 = vmatpush1.msra.mxu0 %v343
    %795 = vmatprep.subr.mxu0 0.0
    %796 = vmatpush1.msra.mxu0 %v344
    %797 = vmatprep.subr.mxu0 0.0
    %798 = vmatpush1.msra.mxu0 %v345
    %799 = vmatprep.subr.mxu0 0.0
    %800 = vmatpush1.msra.mxu0 %v346
    %801 = vmatprep.subr.mxu0 0.0
    %802 = vmatpush1.msra.mxu0 %v347
    %803 = vmatprep.subr.mxu0 0.0
    %804 = vmatpush1.msra.mxu0 %v348
    %805 = vmatprep.subr.mxu0 0.0
    %806 = vmatpush1.msra.mxu0 %v349
    %807 = vmatprep.subr.mxu0 0.0
    %808 = vmatpush1.msra.mxu0 %v350
    %809 = vmatprep.subr.mxu0 0.0
    %810 = vmatpush1.msra.mxu0 %v351
    %811 = vmatprep.subr.mxu0 0.0
    %812 = vmatpush1.msra.mxu0 %v352
    %813 = vmatprep.subr.mxu0 0.0
    %814 = vmatpush1.msra.mxu0 %v353
    %815 = vmatprep.subr.mxu0 0.0
    %816 = vmatpush1.msra.mxu0 %v354
    %817 = vmatprep.subr.mxu0 0.0
    %818 = vmatpush1.msra.mxu0 %v355
    %819 = vmatprep.subr.mxu0 0.0
    %820 = vmatpush1.msra.mxu0 %v356
    %821 = vmatprep.subr.mxu0 0.0
    %822 = vmatpush1.msra.mxu0 %v357
    %823 = vmatprep.subr.mxu0 0.0
    %824 = vmatpush1.msra.mxu0 %v358
    %825 = vmatprep.subr.mxu0 0.0
    %826 = vmatpush1.msra.mxu0 %v359
    %827 = vmatprep.subr.mxu0 0.0
    %828 = vmatpush1.msra.mxu0 %v360
    %829 = vmatprep.subr.mxu0 0.0
    %830 = vmatpush1.msra.mxu0 %v361
    %831 = vmatprep.subr.mxu0 0.0
    %832 = vmatpush1.msra.mxu0 %v362
    %833 = vmatprep.subr.mxu0 0.0
    %834 = vmatpush1.msra.mxu0 %v363
    %835 = vmatprep.subr.mxu0 0.0
    %836 = vmatpush1.msra.mxu0 %v364
    %837 = vmatprep.subr.mxu0 0.0
    %838 = vmatpush1.msra.mxu0 %v365
    %839 = vmatprep.subr.mxu0 0.0
    %840 = vmatpush1.msra.mxu0 %v366
    %841 = vmatprep.subr.mxu0 0.0
    %842 = vmatpush1.msra.mxu0 %v367
    %843 = vmatprep.subr.mxu0 0.0
    %844 = vmatpush1.msra.mxu0 %v368
    %845 = vmatprep.subr.mxu0 0.0
    %846 = vmatpush1.msra.mxu0 %v369
    %847 = vmatprep.subr.mxu0 0.0
    %848 = vmatpush1.msra.mxu0 %v370
    %849 = vmatprep.mubr.f32.mxu0 %v173
    %850 = vmatmul.mubr.f32.gmra.mrb[0].mxu0 %v172
    %v851 = vpop.f32.mrb[0].mxu0
    %v852 = vadd.f32 %v782, %v851
    %v853 = vpop.f32.mrb[0].mxu0
    %854 = vdwg.mxu0
    %855 = vmatprep.subr.mxu0 0.0
    %856 = vmatpush1.msra.mxu0 %v371
    %857 = vmatprep.subr.mxu0 0.0
    %858 = vmatpush1.msra.mxu0 %v372
    %859 = vmatprep.subr.mxu0 0.0
    %860 = vmatpush1.msra.mxu0 %v373
    %861 = vmatprep.subr.mxu0 0.0
    %862 = vmatpush1.msra.mxu0 %v374
    %863 = vmatprep.subr.mxu0 0.0
    %864 = vmatpush1.msra.mxu0 %v375
    %865 = vmatprep.subr.mxu0 0.0
    %866 = vmatpush1.msra.mxu0 %v376
    %867 = vmatprep.subr.mxu0 0.0
    %868 = vmatpush1.msra.mxu0 %v377
    %869 = vmatprep.subr.mxu0 0.0
    %870 = vmatpush1.msra.mxu0 %v378
    %871 = vmatprep.subr.mxu0 0.0
    %872 = vmatpush1.msra.mxu0 %v379
    %873 = vmatprep.subr.mxu0 0.0
    %874 = vmatpush1.msra.mxu0 %v380
    %875 = vmatprep.subr.mxu0 0.0
    %876 = vmatpush1.msra.mxu0 %v381
    %877 = vmatprep.subr.mxu0 0.0
    %878 = vmatpush1.msra.mxu0 %v382
    %879 = vmatprep.subr.mxu0 0.0
    %880 = vmatpush1.msra.mxu0 %v383
    %881 = vmatprep.subr.mxu0 0.0
    %882 = vmatpush1.msra.mxu0 %v384
    %883 = vmatprep.subr.mxu0 0.0
    %884 = vmatpush1.msra.mxu0 %v385
    %885 = vmatprep.subr.mxu0 0.0
    %886 = vmatpush1.msra.mxu0 %v386
    %887 = vmatprep.subr.mxu0 0.0
    %888 = vmatpush1.msra.mxu0 %v387
    %889 = vmatprep.subr.mxu0 0.0
    %890 = vmatpush1.msra.mxu0 %v388
    %891 = vmatprep.subr.mxu0 0.0
    %892 = vmatpush1.msra.mxu0 %v389
    %893 = vmatprep.subr.mxu0 0.0
    %894 = vmatpush1.msra.mxu0 %v390
    %895 = vmatprep.subr.mxu0 0.0
    %896 = vmatpush1.msra.mxu0 %v391
    %897 = vmatprep.subr.mxu0 0.0
    %898 = vmatpush1.msra.mxu0 %v392
    %899 = vmatprep.subr.mxu0 0.0
    %900 = vmatpush1.msra.mxu0 %v393
    %901 = vmatprep.subr.mxu0 0.0
    %902 = vmatpush1.msra.mxu0 %v394
    %903 = vmatprep.subr.mxu0 0.0
    %904 = vmatpush1.msra.mxu0 %v395
    %905 = vmatprep.subr.mxu0 0.0
    %906 = vmatpush1.msra.mxu0 %v396
    %907 = vmatprep.subr.mxu0 0.0
    %908 = vmatpush1.msra.mxu0 %v397
    %909 = vmatprep.subr.mxu0 0.0
    %910 = vmatpush1.msra.mxu0 %v398
    %911 = vmatprep.subr.mxu0 0.0
    %912 = vmatpush1.msra.mxu0 %v399
    %913 = vmatprep.subr.mxu0 0.0
    %914 = vmatpush1.msra.mxu0 %v400
    %915 = vmatprep.subr.mxu0 0.0
    %916 = vmatpush1.msra.mxu0 %v401
    %917 = vmatprep.subr.mxu0 0.0
    %918 = vmatpush1.msra.mxu0 %v402
    %919 = vmatprep.mubr.f32.mxu0 %v175
    %920 = vmatmul.mubr.f32.gmra.mrb[0].mxu0 %v174
    %v921 = vpop.f32.mrb[0].mxu0
    %v922 = vadd.f32 %v852, %v921
    %v923 = vpop.f32.mrb[0].mxu0
    %924 = vdwg.mxu0
    %925 = vmatprep.subr.mxu0 0.0
    %926 = vmatpush1.msra.mxu0 %v403
    %927 = vmatprep.subr.mxu0 0.0
    %928 = vmatpush1.msra.mxu0 %v404
    %929 = vmatprep.subr.mxu0 0.0
    %930 = vmatpush1.msra.mxu0 %v405
    %931 = vmatprep.subr.mxu0 0.0
    %932 = vmatpush1.msra.mxu0 %v406
    %933 = vmatprep.subr.mxu0 0.0
    %934 = vmatpush1.msra.mxu0 %v407
    %935 = vmatprep.subr.mxu0 0.0
    %936 = vmatpush1.msra.mxu0 %v408
    %937 = vmatprep.subr.mxu0 0.0
    %938 = vmatpush1.msra.mxu0 %v409
    %939 = vmatprep.subr.mxu0 0.0
    %940 = vmatpush1.msra.mxu0 %v410
    %941 = vmatprep.subr.mxu0 0.0
    %942 = vmatpush1.msra.mxu0 %v411
    %943 = vmatprep.subr.mxu0 0.0
    %944 = vmatpush1.msra.mxu0 %v412
    %945 = vmatprep.subr.mxu0 0.0
    %946 = vmatpush1.msra.mxu0 %v413
    %947 = vmatprep.subr.mxu0 0.0
    %948 = vmatpush1.msra.mxu0 %v414
    %949 = vmatprep.subr.mxu0 0.0
    %950 = vmatpush1.msra.mxu0 %v415
    %951 = vmatprep.subr.mxu0 0.0
    %952 = vmatpush1.msra.mxu0 %v416
    %953 = vmatprep.subr.mxu0 0.0
    %954 = vmatpush1.msra.mxu0 %v417
    %955 = vmatprep.subr.mxu0 0.0
    %956 = vmatpush1.msra.mxu0 %v418
    %957 = vmatprep.subr.mxu0 0.0
    %958 = vmatpush1.msra.mxu0 %v419
    %959 = vmatprep.subr.mxu0 0.0
    %960 = vmatpush1.msra.mxu0 %v420
    %961 = vmatprep.subr.mxu0 0.0
    %962 = vmatpush1.msra.mxu0 %v421
    %963 = vmatprep.subr.mxu0 0.0
    %964 = vmatpush1.msra.mxu0 %v422
    %965 = vmatprep.subr.mxu0 0.0
    %966 = vmatpush1.msra.mxu0 %v423
    %967 = vmatprep.subr.mxu0 0.0
    %968 = vmatpush1.msra.mxu0 %v424
    %969 = vmatprep.subr.mxu0 0.0
    %970 = vmatpush1.msra.mxu0 %v425
    %971 = vmatprep.subr.mxu0 0.0
    %972 = vmatpush1.msra.mxu0 %v426
    %973 = vmatprep.subr.mxu0 0.0
    %974 = vmatpush1.msra.mxu0 %v427
    %975 = vmatprep.subr.mxu0 0.0
    %976 = vmatpush1.msra.mxu0 %v428
    %977 = vmatprep.subr.mxu0 0.0
    %978 = vmatpush1.msra.mxu0 %v429
    %979 = vmatprep.subr.mxu0 0.0
    %980 = vmatpush1.msra.mxu0 %v430
    %981 = vmatprep.subr.mxu0 0.0
    %982 = vmatpush1.msra.mxu0 %v431
    %983 = vmatprep.subr.mxu0 0.0
    %984 = vmatpush1.msra.mxu0 %v432
    %985 = vmatprep.subr.mxu0 0.0
    %986 = vmatpush1.msra.mxu0 %v433
    %987 = vmatprep.subr.mxu0 0.0
    %988 = vmatpush1.msra.mxu0 %v434
    %989 = vmatprep.mubr.f32.mxu0 %v177
    %990 = vmatmul.mubr.f32.gmra.mrb[0].mxu0 %v176
    %v991 = vpop.f32.mrb[0].mxu0
    %v992 = vadd.f32 %v922, %v991
    %v993 = vpop.f32.mrb[0].mxu0
    %994 = vdwg.mxu0
    %v995 = vadd.f32 %v178, %v992
    %vm996 = vcmask 261120
    %997 = vst.msk [vmem:[#allocation2] sm:$0xff] %vm996, %v995
    // Predicated region
    $region18: #{global_mean_pool.1} parent=1 // pred_check
      %p998 = pneg %p56
    $region19: #{global_mean_pool.1} parent=1 // pred_check_branch
      %1000 = sbr.rel (%p998) target = $region21
    $region20: #{global_mean_pool.1} parent=1 // pred_region
      %v1001 = vld [vmem:[#allocation2] sm:$0xff]
      %v1002 = vld [vmem:[%s1] sm:$0xff]
      %1004 = vset.pattern.permute.xlu0 0
      %1005 = vperm.xlu0 %1004, %v1002
      %v1006 = vpop.permute.xlu0 %1005
      %v1008 = vmul.f32 %v1001, %v1006
      %1009 = vst.msk [vmem:[#allocation2] sm:$0xff] %vm996, %v1008
    $region21: #{global_mean_pool.1} parent=1 // pred_fallthru
      _
    // Predicated region
    $region22: #{global_mean_pool.1} parent=1 // pred_check
      _
    $region23: #{global_mean_pool.1} parent=1 // pred_check_branch
      %1011 = sbr.rel (0) target = $region25
    $region24: #{global_mean_pool.1} parent=1 // pred_region
      %s1013 = ssub.s32 128, 128
      %1014 = vsyncadd [#allocation3], %s1013
      %s1016 = sshll.u32 [#allocation2], 4
      %s1017 = int_to_ptr.vmem [resolvable:$true] %s1016
      %1019 = dma.vmem_to_hbm [thread:$0]  %s1017, 128, %s3, [#allocation3]
    $region25: #{global_mean_pool.1} parent=1 // pred_fallthru
      _
    // Predicated region
    $region26: #{global_mean_pool.1} parent=1 // pred_check
      _
    $region27: #{global_mean_pool.1} parent=1 // pred_check_branch
      %1021 = sbr.rel (0) target = $region29
    $region28: #{global_mean_pool.1} parent=1 // pred_region
      %1022 = dma.done [#allocation3], 128
    $region29: #{global_mean_pool.1} parent=1 // pred_fallthru
      _
    %1023 = vsyncpa [#allocation3], 1

</llo_original>
